<compile_context>
chip_gen: v7x
topology: tpu7x:2x2x1
jax: 0.10.0
libtpu: 0.0.40
codegen_flags: <defaults>
</compile_context>

<pallas_src>
import functools

import jax
import jax.numpy as jnp
import numpy as np
from jax.experimental import pallas as pl
from jax.experimental.pallas import tpu as pltpu

EPS = 1e-5  # PyTorch nn.LayerNorm default eps


def _round_up(x, m):
    return ((x + m - 1) // m) * m


def _choose_tile(m, max_tile_m):
    """Row tile (multiple of 8) and padded row count; grid gets >=2 steps if possible."""
    tm = min(max_tile_m, _round_up(m, 8))
    # v7x megacore: make sure the "parallel" grid axis has >= 2 steps so both
    # TensorCores get work.  v5e/v6e (1 TC/chip) are unaffected.
    if m > 8 and _round_up(m, 8) // tm < 2:
        tm = _round_up(-(-m // 2), 8)
    mp = _round_up(m, tm)
    return tm, mp


# ----------------------------- Pallas kernel ------------------------------ #

def ffn_kernel(x_ref, w1_ref, b1_ref, w2_ref, b2_ref, g_ref, beta_ref, o_ref,
               *, d_model, d_pad):
    x = x_ref[...]                                       # (tm, D) f32, unpadded lanes

    # linear1 + ReLU : bf16 operands, f32 accumulation on the MXU.
    h = jnp.dot(x.astype(jnp.bfloat16), w1_ref[...],
                preferred_element_type=jnp.float32) + b1_ref[...]
    h = jnp.maximum(h, 0.0)

    # linear2 : padded output lanes are exactly 0 (zero-padded W2 columns / b2).
    out = jnp.dot(h.astype(jnp.bfloat16), w2_ref[...],
                  preferred_element_type=jnp.float32) + b2_ref[...]

    # Residual: widen x to the lane-dense output width once, in VMEM
    # (no HBM-side zero padding of the activation).
    if d_pad:
        x = jnp.concatenate(
            [x, jnp.zeros((x.shape[0], d_pad), jnp.float32)], axis=-1)
    y = x + out                                          # (tm, Dp); padded lanes == 0

    # LayerNorm over the d_model valid lanes.  Padded lanes of y are exactly 0,
    # so the plain sums are valid; the centered term at a padded lane is -mean,
    # so its contribution is removed exactly below (no iota mask, no selects).
    inv_d = jnp.float32(1.0 / d_model)
    mean = jnp.sum(y, axis=1, keepdims=True) * inv_d
    c = y - mean
    sq = jnp.sum(c * c, axis=1, keepdims=True)
    if d_pad:
        sq = sq - jnp.float32(d_pad) * mean * mean
    var = sq * inv_d
    o_ref[...] = (c * jax.lax.rsqrt(var + EPS) * g_ref[...]
                  + beta_ref[...]).astype(o_ref.dtype)


# ------------------------------- wrapper ----------------------------------- #

def ffn_forward(x_nchw, params, *, max_tile_m=512):
    """Forward of FeedForwardNetwork.  x_nchw: (N, C, H, W) float32."""
    w1, b1, w2, b2, gamma, beta = params                 # unpadded, see init_params
    N, C, H, W = x_nchw.shape
    D = C * W                                            # d_model
    I = w1.shape[1]                                      # inter_size
    M = N * H                                            # flattened token count

    Dp = _round_up(D, 128)                               # lane-dense output width
    Ip = _round_up(I, 128)                               # lane-dense intermediate width
    tm, Mp = _choose_tile(M, max_tile_m)

    # force_1d: (N,C,H,W) -> (N,H,C,W) -> (M, D).  The transpose is the only
    # wrapper-side HBM pass over the activation; no lane padding is materialized.
    x = jnp.transpose(x_nchw, (0, 2, 1, 3)).reshape(M, D).astype(jnp.float32)
    if Mp > M:
        x = jnp.pad(x, ((0, Mp - M), (0, 0)))

    # Weights as bf16 (MXU-native, halves weight DMA).  Zero padding keeps the
    # padded intermediate/output lanes exactly zero — the LayerNorm relies on it.
    w1p = jnp.pad(w1, ((0, 0), (0, Ip - I))).astype(jnp.bfloat16)     # (D, Ip)
    w2p = jnp.pad(w2, ((0, Ip - I), (0, Dp - D))).astype(jnp.bfloat16)  # (Ip, Dp)
    b1p = jnp.pad(b1, (0, Ip - I)).reshape(1, Ip)                     # f32
    b2p = jnp.pad(b2, (0, Dp - D)).reshape(1, Dp)
    gp = jnp.pad(gamma, (0, Dp - D)).reshape(1, Dp)
    bp = jnp.pad(beta, (0, Dp - D)).reshape(1, Dp)

    kernel = functools.partial(ffn_kernel, d_model=D, d_pad=Dp - D)

    out = pl.pallas_call(
        kernel,
        out_shape=jax.ShapeDtypeStruct((Mp, Dp), jnp.float32),
        grid_spec=pltpu.PrefetchScalarGridSpec(
            num_scalar_prefetch=0,
            grid=(Mp // tm,),
            in_specs=[
                pl.BlockSpec((tm, D), lambda i: (i, 0)),    # x (row-tiled, raw lanes)
                pl.BlockSpec((D, Ip), lambda i: (0, 0)),    # W1 (bf16, resident)
                pl.BlockSpec((1, Ip), lambda i: (0, 0)),    # b1
                pl.BlockSpec((Ip, Dp), lambda i: (0, 0)),   # W2 (bf16, resident)
                pl.BlockSpec((1, Dp), lambda i: (0, 0)),    # b2
                pl.BlockSpec((1, Dp), lambda i: (0, 0)),    # LN gamma
                pl.BlockSpec((1, Dp), lambda i: (0, 0)),    # LN beta
            ],
            out_specs=pl.BlockSpec((tm, Dp), lambda i: (i, 0)),
        ),
        compiler_params=pltpu.CompilerParams(
            dimension_semantics=("parallel",),      # rows independent -> megacore
            vmem_limit_bytes=32 * 1024 * 1024,      # actual need ~2 MiB; 32 MiB is safe headroom
        ),
    )(x, w1p, b1p, w2p, b2p, gp, bp)

    # Drop row / lane padding, restore (N, H, d_model).
    return out[:M, :D].reshape(N, H, D)


def init_params(key, d_model, inter_size):
    # Layout (vs. PyTorch):
    #   linear1.weight (inter, d_model) -> stored as (d_model, inter)
    #   linear2.weight (d_model, inter) -> stored as (inter, d_model)
    #   biases / LayerNorm weight & bias: (dim,)
    ks = jax.random.split(key, 6)
    w1 = jax.random.normal(ks[0], (d_model, inter_size), jnp.float32) / np.sqrt(d_model)
    b1 = 0.1 * jax.random.normal(ks[1], (inter_size,), jnp.float32)
    w2 = jax.random.normal(ks[2], (inter_size, d_model), jnp.float32) / np.sqrt(inter_size)
    b2 = 0.1 * jax.random.normal(ks[3], (d_model,), jnp.float32)
    gamma = 1.0 + 0.1 * jax.random.normal(ks[4], (d_model,), jnp.float32)
    beta = 0.1 * jax.random.normal(ks[5], (d_model,), jnp.float32)
    return w1, b1, w2, b2, gamma, beta


# -------------------- pure-JAX reference (for sanity) ---------------------- #

def ref_forward(x_nchw, params, *, matmul_dtype=jnp.float32):
    w1, b1, w2, b2, gamma, beta = params
    N, C, H, W = x_nchw.shape
    D = C * W
    x = jnp.transpose(x_nchw, (0, 2, 1, 3)).reshape(N, H, D).astype(jnp.float32)
    h = jnp.dot(x.astype(matmul_dtype), w1.astype(matmul_dtype),
                preferred_element_type=jnp.float32) + b1
    h = jax.nn.relu(h)
    o = jnp.dot(h.astype(matmul_dtype), w2.astype(matmul_dtype),
                preferred_element_type=jnp.float32) + b2
    y = x + o
    mean = jnp.mean(y, axis=-1, keepdims=True)
    var = jnp.mean((y - mean) ** 2, axis=-1, keepdims=True)
    return (y - mean) * jax.lax.rsqrt(var + EPS) * gamma + beta


# ---------------------------------- main ----------------------------------- #

if __name__ == "__main__":
    key = jax.random.PRNGKey(0)
    k_x, k_p = jax.random.split(key)

    # NCHW input, as the PyTorch module would see before force_1d.
    N, C, H, W = 2, 4, 16, 16
    d_model = C * W                                   # 64
    expansion_ratio = 4
    inter_size = int(expansion_ratio * d_model)       # 256

    x = jax.random.normal(k_x, (N, C, H, W), jnp.float32)
    params = init_params(k_p, d_model, inter_size)

    out = ffn_forward(x, params)
    out = jax.block_until_ready(out)
    out_np = np.asarray(out)

    # Tight check against a reference that mirrors the kernel's precision
    # (bf16 matmul operands, f32 accumulation): isolates implementation errors.
    ref_bf16 = np.asarray(ref_forward(x, params, matmul_dtype=jnp.bfloat16))
    np.testing.assert_allclose(out_np, ref_bf16, rtol=2e-3, atol=2e-3)

    # Looser check against the full-f32 module semantics (bf16-operand error
    # budget; measured max deviation is ~5e-3 for these shapes/scales).
    ref_f32 = np.asarray(ref_forward(x, params))
    np.testing.assert_allclose(out_np, ref_f32, rtol=2e-2, atol=2e-2)

    print("KERNEL_OK")
</pallas_src>

<mosaic_0001>
module attributes {stable_mosaic.version = 11 : i64} {
  func.func @ffn_kernel(%arg0: i32, %arg1: memref<16x64xf32, #tpu.memory_space<vmem>>, %arg2: memref<64x256xbf16, #tpu.memory_space<vmem>>, %arg3: memref<1x256xf32, #tpu.memory_space<vmem>>, %arg4: memref<256x128xbf16, #tpu.memory_space<vmem>>, %arg5: memref<1x128xf32, #tpu.memory_space<vmem>>, %arg6: memref<1x128xf32, #tpu.memory_space<vmem>>, %arg7: memref<1x128xf32, #tpu.memory_space<vmem>>, %arg8: memref<16x128xf32, #tpu.memory_space<vmem>>) attributes {dimension_semantics = [#tpu.dimension_semantics<parallel>], iteration_bounds = array<i64: 2>, scalar_prefetch = 0 : i64, scratch_operands = 0 : i64, tpu.core_type = #tpu.core_type<tc>, window_params = [{transform_indices = @transform_0, window_bounds = array<i64: 16, 64>}, {pipeline_mode = #tpu.pipeline_mode<synchronous>, transform_indices = @transform_1, window_bounds = array<i64: 64, 256>}, {pipeline_mode = #tpu.pipeline_mode<synchronous>, transform_indices = @transform_2, window_bounds = array<i64: 1, 256>}, {pipeline_mode = #tpu.pipeline_mode<synchronous>, transform_indices = @transform_3, window_bounds = array<i64: 256, 128>}, {pipeline_mode = #tpu.pipeline_mode<synchronous>, transform_indices = @transform_4, window_bounds = array<i64: 1, 128>}, {pipeline_mode = #tpu.pipeline_mode<synchronous>, transform_indices = @transform_5, window_bounds = array<i64: 1, 128>}, {pipeline_mode = #tpu.pipeline_mode<synchronous>, transform_indices = @transform_6, window_bounds = array<i64: 1, 128>}, {transform_indices = @transform_7, window_bounds = array<i64: 16, 128>}]} {
    %c0 = arith.constant 0 : index
    %c0_0 = arith.constant 0 : index
    %0 = vector.load %arg1[%c0, %c0_0] : memref<16x64xf32, #tpu.memory_space<vmem>>, vector<16x64xf32>
    %1 = arith.truncf %0 : vector<16x64xf32> to vector<16x64xbf16>
    %c0_1 = arith.constant 0 : index
    %c0_2 = arith.constant 0 : index
    %2 = vector.load %arg2[%c0_1, %c0_2] : memref<64x256xbf16, #tpu.memory_space<vmem>>, vector<64x256xbf16>
    %cst = arith.constant dense<0.000000e+00> : vector<16x256xf32>
    %3 = tpu.matmul %1, %2, %cst {dimension_numbers = #tpu.dot_dimension_numbers<[1], [0], [0], [1], [0, 0, 1, 1], [], []>} : vector<16x64xbf16>, vector<64x256xbf16>, vector<16x256xf32> -> vector<16x256xf32>
    %c0_3 = arith.constant 0 : index
    %c0_4 = arith.constant 0 : index
    %4 = vector.load %arg3[%c0_3, %c0_4] : memref<1x256xf32, #tpu.memory_space<vmem>>, vector<1x256xf32>
    %5 = vector.broadcast %4 : vector<1x256xf32> to vector<16x256xf32>
    %6 = arith.addf %3, %5 : vector<16x256xf32>
    %cst_5 = arith.constant 0.000000e+00 : f32
    %7 = vector.broadcast %cst_5 : f32 to vector<16x256xf32>
    %8 = arith.maximumf %6, %7 : vector<16x256xf32>
    %9 = arith.truncf %8 : vector<16x256xf32> to vector<16x256xbf16>
    %c0_6 = arith.constant 0 : index
    %c0_7 = arith.constant 0 : index
    %10 = vector.load %arg4[%c0_6, %c0_7] : memref<256x128xbf16, #tpu.memory_space<vmem>>, vector<256x128xbf16>
    %cst_8 = arith.constant dense<0.000000e+00> : vector<16x128xf32>
    %11 = tpu.matmul %9, %10, %cst_8 {dimension_numbers = #tpu.dot_dimension_numbers<[1], [0], [0], [1], [0, 0, 1, 1], [], []>} : vector<16x256xbf16>, vector<256x128xbf16>, vector<16x128xf32> -> vector<16x128xf32>
    %c0_9 = arith.constant 0 : index
    %c0_10 = arith.constant 0 : index
    %12 = vector.load %arg5[%c0_9, %c0_10] : memref<1x128xf32, #tpu.memory_space<vmem>>, vector<1x128xf32>
    %13 = vector.broadcast %12 : vector<1x128xf32> to vector<16x128xf32>
    %14 = arith.addf %11, %13 : vector<16x128xf32>
    %cst_11 = arith.constant 0.000000e+00 : f32
    %15 = vector.broadcast %cst_11 : f32 to vector<16x64xf32>
    %16 = tpu.concatenate %0, %15 in 1 : vector<16x64xf32>, vector<16x64xf32> -> vector<16x128xf32>
    %17 = arith.addf %16, %14 : vector<16x128xf32>
    %cst_12 = arith.constant dense<0.000000e+00> : vector<16xf32>
    %18 = vector.multi_reduction <add>, %17, %cst_12 [1] : vector<16x128xf32> to vector<16xf32>
    %19 = vector.shape_cast %18 : vector<16xf32> to vector<16x1xf32>
    %cst_13 = arith.constant 1.562500e-02 : f32
    %20 = vector.broadcast %cst_13 : f32 to vector<16x1xf32>
    %21 = arith.mulf %19, %20 : vector<16x1xf32>
    %22 = vector.broadcast %21 : vector<16x1xf32> to vector<16x128xf32>
    %23 = arith.subf %17, %22 : vector<16x128xf32>
    %24 = arith.mulf %23, %23 : vector<16x128xf32>
    %cst_14 = arith.constant dense<0.000000e+00> : vector<16xf32>
    %25 = vector.multi_reduction <add>, %24, %cst_14 [1] : vector<16x128xf32> to vector<16xf32>
    %26 = vector.shape_cast %25 : vector<16xf32> to vector<16x1xf32>
    %cst_15 = arith.constant 6.400000e+01 : f32
    %27 = vector.broadcast %cst_15 : f32 to vector<16x1xf32>
    %28 = arith.mulf %27, %21 : vector<16x1xf32>
    %29 = arith.mulf %28, %21 : vector<16x1xf32>
    %30 = arith.subf %26, %29 : vector<16x1xf32>
    %cst_16 = arith.constant 1.562500e-02 : f32
    %31 = vector.broadcast %cst_16 : f32 to vector<16x1xf32>
    %32 = arith.mulf %30, %31 : vector<16x1xf32>
    %cst_17 = arith.constant 9.99999974E-6 : f32
    %33 = vector.broadcast %cst_17 : f32 to vector<16x1xf32>
    %34 = arith.addf %32, %33 : vector<16x1xf32>
    %35 = math.rsqrt %34 : vector<16x1xf32>
    %36 = vector.broadcast %35 : vector<16x1xf32> to vector<16x128xf32>
    %37 = arith.mulf %23, %36 : vector<16x128xf32>
    %c0_18 = arith.constant 0 : index
    %c0_19 = arith.constant 0 : index
    %38 = vector.load %arg6[%c0_18, %c0_19] : memref<1x128xf32, #tpu.memory_space<vmem>>, vector<1x128xf32>
    %39 = vector.broadcast %38 : vector<1x128xf32> to vector<16x128xf32>
    %40 = arith.mulf %37, %39 : vector<16x128xf32>
    %c0_20 = arith.constant 0 : index
    %c0_21 = arith.constant 0 : index
    %41 = vector.load %arg7[%c0_20, %c0_21] : memref<1x128xf32, #tpu.memory_space<vmem>>, vector<1x128xf32>
    %42 = vector.broadcast %41 : vector<1x128xf32> to vector<16x128xf32>
    %43 = arith.addf %40, %42 : vector<16x128xf32>
    %c0_22 = arith.constant 0 : index
    %c0_23 = arith.constant 0 : index
    %44 = vector.load %arg8[%c0_22, %c0_23] : memref<16x128xf32, #tpu.memory_space<vmem>>, vector<16x128xf32>
    tpu.vector_store %arg8[%c0_22, %c0_23], %43 {strides = array<i32>} : memref<16x128xf32, #tpu.memory_space<vmem>>, vector<16x128xf32>,
    return
  }
  func.func @transform_0(%arg0: i32) -> (i32, i32) {
    %c0_i32 = arith.constant 0 : i32
    %c0_i32_0 = arith.constant 0 : i32
    return %arg0, %c0_i32 : i32, i32
  }
  func.func @transform_1(%arg0: i32) -> (i32, i32) {
    %c0_i32 = arith.constant 0 : i32
    %c0_i32_0 = arith.constant 0 : i32
    %c0_i32_1 = arith.constant 0 : i32
    return %c0_i32, %c0_i32_0 : i32, i32
  }
  func.func @transform_2(%arg0: i32) -> (i32, i32) {
    %c0_i32 = arith.constant 0 : i32
    %c0_i32_0 = arith.constant 0 : i32
    %c0_i32_1 = arith.constant 0 : i32
    return %c0_i32, %c0_i32_0 : i32, i32
  }
  func.func @transform_3(%arg0: i32) -> (i32, i32) {
    %c0_i32 = arith.constant 0 : i32
    %c0_i32_0 = arith.constant 0 : i32
    %c0_i32_1 = arith.constant 0 : i32
    return %c0_i32, %c0_i32_0 : i32, i32
  }
  func.func @transform_4(%arg0: i32) -> (i32, i32) {
    %c0_i32 = arith.constant 0 : i32
    %c0_i32_0 = arith.constant 0 : i32
    %c0_i32_1 = arith.constant 0 : i32
    return %c0_i32, %c0_i32_0 : i32, i32
  }
  func.func @transform_5(%arg0: i32) -> (i32, i32) {
    %c0_i32 = arith.constant 0 : i32
    %c0_i32_0 = arith.constant 0 : i32
    %c0_i32_1 = arith.constant 0 : i32
    return %c0_i32, %c0_i32_0 : i32, i32
  }
  func.func @transform_6(%arg0: i32) -> (i32, i32) {
    %c0_i32 = arith.constant 0 : i32
    %c0_i32_0 = arith.constant 0 : i32
    %c0_i32_1 = arith.constant 0 : i32
    return %c0_i32, %c0_i32_0 : i32, i32
  }
  func.func @transform_7(%arg0: i32) -> (i32, i32) {
    %c0_i32 = arith.constant 0 : i32
    %c0_i32_0 = arith.constant 0 : i32
    return %arg0, %c0_i32 : i32, i32
  }
}

</mosaic_0001>

<llo_original>
// kernel: tpu_custom_call.1
$region0: #{tpu_custom_call.1}
  #allocation0 [shape = 'u32[]', space=smem, size = 0x4, offset = 0x4, fixed_abs, tag = 'smem constant byte address 0x4 - core index']
  #allocation1 [shape = 'u32[144,128]{1,0:T(1,128)}', space=vmem, size = 0x12000, scoped, tag = 'internal scratch']
  %s0 = inlined_call_operand.hbm [shape: f32[32,64], index: 0, kind: input, shape index: {}]
  %s1 = inlined_call_operand.hbm [shape: bf16[64,256], index: 1, kind: input, shape index: {}]
  %s2 = inlined_call_operand.vmem [shape: f32[1,256], index: 2, kind: input, shape index: {}]
  %s3 = inlined_call_operand.hbm [shape: bf16[256,128], index: 3, kind: input, shape index: {}]
  %s4 = inlined_call_operand.vmem [shape: f32[1,128], index: 4, kind: input, shape index: {}]
  %s5 = inlined_call_operand.vmem [shape: f32[1,128], index: 5, kind: input, shape index: {}]
  %s6 = inlined_call_operand.vmem [shape: f32[1,128], index: 6, kind: input, shape index: {}]
  %s7 = inlined_call_operand.hbm [shape: f32[32,128], index: 7, kind: output, shape index: {}]
  %s8 = sld [smem:[#allocation0]]
  $region73: #{tpu_custom_call.1} parent=0
    _
  %s10 = ssub.s32 1, %s8
  %s11 = scalar_select 0, %s10, %s8
  $region1: #{tpu_custom_call.1} parent=0
    #allocation2 [shape = 'u8[16384]{0}', space=vmem, size = 0x4000, scoped, tag = 'input window, operand 0']
    #allocation3 [shape = 's32[2]{0}', space=sflag, size = 0x8, scoped, tag = 'scoped memory for tpu_custom_call.1']
    #allocation4 [shape = 's32[2]{0}', space=sflag, size = 0x8, scoped, tag = 'scoped memory for tpu_custom_call.1']
    #allocation5 [shape = 'u8[32768]{0}', space=vmem, size = 0x8000, scoped, tag = 'input window, operand 1, single buffered']
    #allocation6 [shape = 's32[1]{0}', space=sflag, size = 0x4, scoped, tag = 'scoped memory for tpu_custom_call.1']
    #allocation7 [shape = 'u8[65536]{0}', space=vmem, size = 0x10000, scoped, tag = 'input window, operand 3, single buffered']
    #allocation8 [shape = 'u8[16384]{0}', space=vmem, size = 0x4000, scoped, tag = 'output window, operand 0']
    %12 = vsyncpa [#allocation3], 0
    %s13 = scalar_lea.sflag [#allocation3], 1
    %14 = vsyncpa %s13, 0
    %15 = vsyncpa [#allocation6], 0
    %16 = vsyncpa [#allocation4], 0
    %s17 = scalar_lea.sflag [#allocation4], 1
    %18 = vsyncpa %s17, 0
    loop: start=0, step=1, limit=4
    $region2: #{tpu_custom_call.1} parent=1 // loop_pre_header
      _
    $region3: #{tpu_custom_call.1} parent=1 // loop_header
      %s20 = sphi 0, %s24
      %p21 = scmp.ge.s32.totalorder %s20, 4
      %s30 = sphi 0, %s32
      %s33 = sphi 0, %s30
      %s34 = sphi 0, %s33
      %s50 = sphi 0, %s34
      %s54 = sphi 0, %s54
      %s56 = sphi 0, %s54
      %s57 = sphi 0, %s56
      %s71 = sphi 0, %s57
      %s75 = sphi 0, %s75
      %s77 = sphi 0, %s75
      %s78 = sphi 0, %s77
      %s92 = sphi 0, %s78
      %s96 = sphi 0, %s96
      %s98 = sphi 0, %s96
      %s99 = sphi 0, %s98
      %s113 = sphi 0, %s99
      %s117 = sphi 0, %s117
      %s119 = sphi 0, %s117
      %s120 = sphi 0, %s119
      %s134 = sphi 0, %s120
      %s138 = sphi 0, %s138
      %s140 = sphi 0, %s138
      %s141 = sphi 0, %s140
      %s155 = sphi 0, %s141
      %s159 = sphi 0, %s159
      %s161 = sphi 0, %s159
      %s162 = sphi 0, %s161
      %s176 = sphi 0, %s162
      %s182 = sphi 0, %s184
      %s185 = sphi 0, %s182
      %s186 = sphi 0, %s185
      %s202 = sphi 0, %s186
    $region4: #{tpu_custom_call.1} parent=1 // loop_header_branch
      %23 = sbr.rel (%p21) target = $region8
    $region5: #{tpu_custom_call.1} parent=1 // loop_body
      %s25 = ssub.s32 %s20, 1
      %s26 = ssub.s32 %s20, 2
      %s27 = sadd.s32 %s20, 1
      %s28 = ssub.s32 %s20, %s27
      %p29 = scmp.eq.s32.totalorder %s28, 0
      %s31 = sadd.s32 %s30, 1
      %s32 = scalar_select %p29, %s30, %s31
      %p35 = pneg %p29
      %p36 = scmp.eq.s32.totalorder %s20, 1
      %p37 = por %p35, %p36
      %p38 = scmp.ne.s32.totalorder %s30, %s33
      %p39 = scmp.eq.s32.totalorder %s20, 0
      %p40 = por %p38, %p39
      %p41 = scmp.ne.s32.totalorder %s30, %s33
      %p42 = scmp.eq.s32.totalorder %s25, 1
      %p43 = por %p41, %p42
      %p44 = scmp.ne.s32.totalorder %s33, %s34
      %p45 = scmp.eq.s32.totalorder %s25, 0
      %p46 = por %p44, %p45
      %p47 = scmp.ne.s32.totalorder %s33, %s34
      %p48 = scmp.eq.s32.totalorder %s26, 1
      %p49 = por %p47, %p48
      %p51 = scmp.ne.s32.totalorder %s34, %s50
      %p52 = scmp.eq.s32.totalorder %s26, 0
      %p53 = por %p51, %p52
      %s55 = sadd.s32 %s54, 1
      %p58 = scmp.eq.s32.totalorder %s20, 1
      %p59 = scmp.ne.s32.totalorder %s54, %s56
      %p60 = scmp.eq.s32.totalorder %s20, 0
      %p61 = por %p59, %p60
      %p62 = scmp.ne.s32.totalorder %s54, %s56
      %p63 = scmp.eq.s32.totalorder %s25, 1
      %p64 = por %p62, %p63
      %p65 = scmp.ne.s32.totalorder %s56, %s57
      %p66 = scmp.eq.s32.totalorder %s25, 0
      %p67 = por %p65, %p66
      %p68 = scmp.ne.s32.totalorder %s56, %s57
      %p69 = scmp.eq.s32.totalorder %s26, 1
      %p70 = por %p68, %p69
      %p72 = scmp.ne.s32.totalorder %s57, %s71
      %p73 = scmp.eq.s32.totalorder %s26, 0
      %p74 = por %p72, %p73
      %s76 = sadd.s32 %s75, 1
      %p79 = scmp.eq.s32.totalorder %s20, 1
      %p80 = scmp.ne.s32.totalorder %s75, %s77
      %p81 = scmp.eq.s32.totalorder %s20, 0
      %p82 = por %p80, %p81
      %p83 = scmp.ne.s32.totalorder %s75, %s77
      %p84 = scmp.eq.s32.totalorder %s25, 1
      %p85 = por %p83, %p84
      %p86 = scmp.ne.s32.totalorder %s77, %s78
      %p87 = scmp.eq.s32.totalorder %s25, 0
      %p88 = por %p86, %p87
      %p89 = scmp.ne.s32.totalorder %s77, %s78
      %p90 = scmp.eq.s32.totalorder %s26, 1
      %p91 = por %p89, %p90
      %p93 = scmp.ne.s32.totalorder %s78, %s92
      %p94 = scmp.eq.s32.totalorder %s26, 0
      %p95 = por %p93, %p94
      %s97 = sadd.s32 %s96, 1
      %p100 = scmp.eq.s32.totalorder %s20, 1
      %p101 = scmp.ne.s32.totalorder %s96, %s98
      %p102 = scmp.eq.s32.totalorder %s20, 0
      %p103 = por %p101, %p102
      %p104 = scmp.ne.s32.totalorder %s96, %s98
      %p105 = scmp.eq.s32.totalorder %s25, 1
      %p106 = por %p104, %p105
      %p107 = scmp.ne.s32.totalorder %s98, %s99
      %p108 = scmp.eq.s32.totalorder %s25, 0
      %p109 = por %p107, %p108
      %p110 = scmp.ne.s32.totalorder %s98, %s99
      %p111 = scmp.eq.s32.totalorder %s26, 1
      %p112 = por %p110, %p111
      %p114 = scmp.ne.s32.totalorder %s99, %s113
      %p115 = scmp.eq.s32.totalorder %s26, 0
      %p116 = por %p114, %p115
      %s118 = sadd.s32 %s117, 1
      %p121 = scmp.eq.s32.totalorder %s20, 1
      %p122 = scmp.ne.s32.totalorder %s117, %s119
      %p123 = scmp.eq.s32.totalorder %s20, 0
      %p124 = por %p122, %p123
      %p125 = scmp.ne.s32.totalorder %s117, %s119
      %p126 = scmp.eq.s32.totalorder %s25, 1
      %p127 = por %p125, %p126
      %p128 = scmp.ne.s32.totalorder %s119, %s120
      %p129 = scmp.eq.s32.totalorder %s25, 0
      %p130 = por %p128, %p129
      %p131 = scmp.ne.s32.totalorder %s119, %s120
      %p132 = scmp.eq.s32.totalorder %s26, 1
      %p133 = por %p131, %p132
      %p135 = scmp.ne.s32.totalorder %s120, %s134
      %p136 = scmp.eq.s32.totalorder %s26, 0
      %p137 = por %p135, %p136
      %s139 = sadd.s32 %s138, 1
      %p142 = scmp.eq.s32.totalorder %s20, 1
      %p143 = scmp.ne.s32.totalorder %s138, %s140
      %p144 = scmp.eq.s32.totalorder %s20, 0
      %p145 = por %p143, %p144
      %p146 = scmp.ne.s32.totalorder %s138, %s140
      %p147 = scmp.eq.s32.totalorder %s25, 1
      %p148 = por %p146, %p147
      %p149 = scmp.ne.s32.totalorder %s140, %s141
      %p150 = scmp.eq.s32.totalorder %s25, 0
      %p151 = por %p149, %p150
      %p152 = scmp.ne.s32.totalorder %s140, %s141
      %p153 = scmp.eq.s32.totalorder %s26, 1
      %p154 = por %p152, %p153
      %p156 = scmp.ne.s32.totalorder %s141, %s155
      %p157 = scmp.eq.s32.totalorder %s26, 0
      %p158 = por %p156, %p157
      %s160 = sadd.s32 %s159, 1
      %p163 = scmp.eq.s32.totalorder %s20, 1
      %p164 = scmp.ne.s32.totalorder %s159, %s161
      %p165 = scmp.eq.s32.totalorder %s20, 0
      %p166 = por %p164, %p165
      %p167 = scmp.ne.s32.totalorder %s159, %s161
      %p168 = scmp.eq.s32.totalorder %s25, 1
      %p169 = por %p167, %p168
      %p170 = scmp.ne.s32.totalorder %s161, %s162
      %p171 = scmp.eq.s32.totalorder %s25, 0
      %p172 = por %p170, %p171
      %p173 = scmp.ne.s32.totalorder %s161, %s162
      %p174 = scmp.eq.s32.totalorder %s26, 1
      %p175 = por %p173, %p174
      %p177 = scmp.ne.s32.totalorder %s162, %s176
      %p178 = scmp.eq.s32.totalorder %s26, 0
      %p179 = por %p177, %p178
      %s180 = ssub.s32 %s20, %s27
      %p181 = scmp.eq.s32.totalorder %s180, 0
      %s183 = sadd.s32 %s182, 1
      %s184 = scalar_select %p181, %s182, %s183
      %p187 = pneg %p181
      %p188 = scmp.eq.s32.totalorder %s20, 1
      %p189 = por %p187, %p188
      %p190 = scmp.ne.s32.totalorder %s182, %s185
      %p191 = scmp.eq.s32.totalorder %s20, 0
      %p192 = por %p190, %p191
      %p193 = scmp.ne.s32.totalorder %s182, %s185
      %p194 = scmp.eq.s32.totalorder %s25, 1
      %p195 = por %p193, %p194
      %p196 = scmp.ne.s32.totalorder %s185, %s186
      %p197 = scmp.eq.s32.totalorder %s25, 0
      %p198 = por %p196, %p197
      %p199 = scmp.ne.s32.totalorder %s185, %s186
      %p200 = scmp.eq.s32.totalorder %s26, 1
      %p201 = por %p199, %p200
      %p203 = scmp.ne.s32.totalorder %s186, %s202
      %p204 = scmp.eq.s32.totalorder %s26, 0
      %p205 = por %p203, %p204
      %p206 = scmp.le.s32.totalorder 1, %s20
      %p207 = scmp.lt.s32.totalorder %s20, 3
      %p208 = pnand %p206, %p207
      %p209 = pneg %p208
      // Predicated region
      $region9: #{tpu_custom_call.1} parent=5 // pred_check
        _
      $region10: #{tpu_custom_call.1} parent=5 // pred_check_branch
        %211 = sbr.rel (%p208) target = $region12
      $region11: #{tpu_custom_call.1} parent=5 // pred_region
        %s212 = ssub.s32 %s20, 1
        // Predicated region
        $region13: #{tpu_custom_call.1} parent=11 // pred_check
          %p213 = pneg %p67
        $region14: #{tpu_custom_call.1} parent=11 // pred_check_branch
          %215 = sbr.rel (%p213) target = $region16
        $region15: #{tpu_custom_call.1} parent=11 // pred_region
          %s217 = ssub.s32 1024, 1024
          %218 = vsyncadd [#allocation6], %s217
          %s219 = sshll.u32 [#allocation5], 4
          %s220 = int_to_ptr.vmem [resolvable:$true] %s219
          %225 = dma.hbm_to_vmem [thread:$0]  %s1, 1024, %s220, [#allocation6], 128, 128, 8
        $region16: #{tpu_custom_call.1} parent=11 // pred_fallthru
          _
        // Predicated region
        $region17: #{tpu_custom_call.1} parent=11 // pred_check
          %p226 = pneg %p88
        $region18: #{tpu_custom_call.1} parent=11 // pred_check_branch
          %228 = sbr.rel (%p226) target = $region20
        $region19: #{tpu_custom_call.1} parent=11 // pred_region
          _
        $region20: #{tpu_custom_call.1} parent=11 // pred_fallthru
          _
        // Predicated region
        $region21: #{tpu_custom_call.1} parent=11 // pred_check
          %p229 = pneg %p109
        $region22: #{tpu_custom_call.1} parent=11 // pred_check_branch
          %231 = sbr.rel (%p229) target = $region24
        $region23: #{tpu_custom_call.1} parent=11 // pred_region
          %s233 = ssub.s32 2048, 2048
          %234 = vsyncadd [#allocation6], %s233
          %s235 = sshll.u32 [#allocation7], 4
          %s236 = int_to_ptr.vmem [resolvable:$true] %s235
          %241 = dma.hbm_to_vmem [thread:$0]  %s3, 2048, %s236, [#allocation6], 64, 64, 4
        $region24: #{tpu_custom_call.1} parent=11 // pred_fallthru
          _
        // Predicated region
        $region25: #{tpu_custom_call.1} parent=11 // pred_check
          %p242 = pneg %p130
        $region26: #{tpu_custom_call.1} parent=11 // pred_check_branch
          %244 = sbr.rel (%p242) target = $region28
        $region27: #{tpu_custom_call.1} parent=11 // pred_region
          _
        $region28: #{tpu_custom_call.1} parent=11 // pred_fallthru
          _
        // Predicated region
        $region29: #{tpu_custom_call.1} parent=11 // pred_check
          %p245 = pneg %p151
        $region30: #{tpu_custom_call.1} parent=11 // pred_check_branch
          %247 = sbr.rel (%p245) target = $region32
        $region31: #{tpu_custom_call.1} parent=11 // pred_region
          _
        $region32: #{tpu_custom_call.1} parent=11 // pred_fallthru
          _
        // Predicated region
        $region33: #{tpu_custom_call.1} parent=11 // pred_check
          %p248 = pneg %p172
        $region34: #{tpu_custom_call.1} parent=11 // pred_check_branch
          %250 = sbr.rel (%p248) target = $region36
        $region35: #{tpu_custom_call.1} parent=11 // pred_region
          _
        $region36: #{tpu_custom_call.1} parent=11 // pred_fallthru
          _
      $region12: #{tpu_custom_call.1} parent=5 // pred_fallthru
        _
      %p251 = scmp.lt.s32.totalorder %s20, 2
      // Predicated region
      $region37: #{tpu_custom_call.1} parent=5 // pred_check
        %p252 = pneg %p251
      $region38: #{tpu_custom_call.1} parent=5 // pred_check_branch
        %254 = sbr.rel (%p252) target = $region40
      $region39: #{tpu_custom_call.1} parent=5 // pred_region
        // Predicated region
        $region41: #{tpu_custom_call.1} parent=39 // pred_check
          %p255 = pneg %p40
        $region42: #{tpu_custom_call.1} parent=39 // pred_check_branch
          %257 = sbr.rel (%p255) target = $region44
        $region43: #{tpu_custom_call.1} parent=39 // pred_region
          %s258 = sand.u32 %s30, 1
          %s259 = scalar_lea.sflag [#allocation3], %s258
          %s260 = sand.u32 %s30, 1
          %s261 = smul.addr %s260, 16
          %s262 = scalar_lea.vmem [#allocation2], %s261
          %s263 = smul.u32 2, %s20
          %s265 = ssub.s32 256, 256
          %266 = vsyncadd %s259, %s265
          %s267 = smul.addr %s263, 128
          %s268 = scalar_lea.hbm %s0, %s267
          %s269 = sshll.u32 %s262, 4
          %s270 = int_to_ptr.vmem [resolvable:$true] %s269
          %275 = dma.hbm_to_vmem [thread:$0]  %s268, 256, %s270, %s259, 128, 128, 8
        $region44: #{tpu_custom_call.1} parent=39 // pred_fallthru
          _
      $region40: #{tpu_custom_call.1} parent=5 // pred_fallthru
        _
      %p276 = scmp.le.s32.totalorder 1, %s20
      %p277 = scmp.lt.s32.totalorder %s20, 3
      %p278 = pnand %p276, %p277
      %p279 = pneg %p278
      // Predicated region
      $region45: #{tpu_custom_call.1} parent=5 // pred_check
        _
      $region46: #{tpu_custom_call.1} parent=5 // pred_check_branch
        %281 = sbr.rel (%p278) target = $region48
      $region47: #{tpu_custom_call.1} parent=5 // pred_region
        %s282 = ssub.s32 %s20, 1
        %s283 = sand.u32 %s33, 1
        %s284 = scalar_lea.sflag [#allocation3], %s283
        %s285 = sand.u32 %s33, 1
        %s286 = smul.addr %s285, 16
        %s287 = scalar_lea.vmem [#allocation2], %s286
        // Predicated region
        $region49: #{tpu_custom_call.1} parent=47 // pred_check
          %p288 = pneg %p46
        $region50: #{tpu_custom_call.1} parent=47 // pred_check_branch
          %290 = sbr.rel (%p288) target = $region52
        $region51: #{tpu_custom_call.1} parent=47 // pred_region
          %291 = dma.done %s284, 256
        $region52: #{tpu_custom_call.1} parent=47 // pred_fallthru
          _
        // Predicated region
        $region53: #{tpu_custom_call.1} parent=47 // pred_check
          %p292 = pneg %p67
        $region54: #{tpu_custom_call.1} parent=47 // pred_check_branch
          %294 = sbr.rel (%p292) target = $region56
        $region55: #{tpu_custom_call.1} parent=47 // pred_region
          %295 = dma.done [#allocation6], 1024
        $region56: #{tpu_custom_call.1} parent=47 // pred_fallthru
          _
        // Predicated region
        $region57: #{tpu_custom_call.1} parent=47 // pred_check
          %p296 = pneg %p109
        $region58: #{tpu_custom_call.1} parent=47 // pred_check_branch
          %298 = sbr.rel (%p296) target = $region60
        $region59: #{tpu_custom_call.1} parent=47 // pred_region
          %299 = dma.done [#allocation6], 2048
        $region60: #{tpu_custom_call.1} parent=47 // pred_fallthru
          _
        %s300 = sand.u32 %s33, 1
        %s301 = scalar_lea.sflag [#allocation3], %s300
        %s302 = sand.u32 %s33, 1
        %s303 = smul.addr %s302, 16
        %s304 = scalar_lea.vmem [#allocation2], %s303
        %p305 = pneg %p46
        %p306 = pneg %p43
        %p307 = pneg %p67
        %p308 = pneg %p64
        %p309 = pneg %p88
        %p310 = pneg %p85
        %p311 = pneg %p109
        %p312 = pneg %p106
        %p313 = pneg %p130
        %p314 = pneg %p127
        %p315 = pneg %p151
        %p316 = pneg %p148
        %p317 = pneg %p172
        %p318 = pneg %p169
        %p319 = pneg %p198
        %p320 = pneg %p195
        %s321 = sand.u32 %s185, 1
        %s322 = scalar_lea.sflag [#allocation4], %s321
        %s323 = sand.u32 %s185, 1
        %s324 = smul.addr %s323, 16
        %s325 = scalar_lea.vmem [#allocation8], %s324
        %s326 = smul.u32 2, %s25
        %s327 = smul.u32 2, %s25
        %v329 = vld [vmem:[%s287] sm:$0xff]
        %v330 = vld [vmem:[%s287 + $0x8] sm:$0xff]
        %v331 = vpack.c.bf16 %v330, %v329
        %v332 = vld [vmem:[#allocation5] sm:$0xff]
        %v333 = vld [vmem:[#allocation5 + $0x8] sm:$0xff]
        %v334 = vld [vmem:[#allocation5 + $0x10] sm:$0xff]
        %v335 = vld [vmem:[#allocation5 + $0x18] sm:$0xff]
        %v336 = vld [vmem:[#allocation5 + $0x20] sm:$0xff]
        %v337 = vld [vmem:[#allocation5 + $0x28] sm:$0xff]
        %v338 = vld [vmem:[#allocation5 + $0x30] sm:$0xff]
        %v339 = vld [vmem:[#allocation5 + $0x38] sm:$0xff]
        %v340 = vld [vmem:[%s2] sm:$0x3]
        %v342 = vlaneseq
        %v343 = vshrl.u32 %v342, 7
        %v344 = vsub.s32 0, %v343
        %v345 = vrot.slane %v340, %v344
        %v346 = vlaneseq
        %v347 = vshrl.u32 %v346, 7
        %v348 = vsub.s32 1, %v347
        %v349 = vrot.slane %v340, %v348
        %v360 = vunpack.c.l.b16 %v332
        %v361 = vunpack.c.h.b16 %v332
        %v362 = vunpack.c.l.b16 %v333
        %v363 = vunpack.c.h.b16 %v333
        %v364 = vunpack.c.l.b16 %v334
        %v365 = vunpack.c.h.b16 %v334
        %v366 = vunpack.c.l.b16 %v335
        %v367 = vunpack.c.h.b16 %v335
        %v368 = vunpack.c.l.b16 %v336
        %v369 = vunpack.c.h.b16 %v336
        %v370 = vunpack.c.l.b16 %v337
        %v371 = vunpack.c.h.b16 %v337
        %v372 = vunpack.c.l.b16 %v338
        %v373 = vunpack.c.h.b16 %v338
        %v374 = vunpack.c.l.b16 %v339
        %v375 = vunpack.c.h.b16 %v339
        %v376 = vpack.c.b16 %v362, %v360
        %v377 = vpack.c.b16 %v363, %v361
        %v378 = vpack.c.b16 %v366, %v364
        %v379 = vpack.c.b16 %v367, %v365
        %v380 = vpack.c.b16 %v370, %v368
        %v381 = vpack.c.b16 %v371, %v369
        %v382 = vpack.c.b16 %v374, %v372
        %v383 = vpack.c.b16 %v375, %v373
        %vm392 = vcmask 523264
        %v394 = vsel %vm392, %v331, 0
        %396 = vmatprep.subr.bf16.mxu0 %v377
        %397 = vmatpush1.bf16.msra.mxu0 %v376
        %398 = vmatprep.subr.bf16.mxu0 %v379
        %399 = vmatpush1.bf16.msra.mxu0 %v378
        %400 = vmatprep.subr.bf16.mxu0 %v381
        %401 = vmatpush1.bf16.msra.mxu0 %v380
        %402 = vmatprep.subr.bf16.mxu0 %v383
        %403 = vmatpush1.bf16.msra.mxu0 %v382
        %404 = vmatprep.subr.bf16.mxu0 0
        %405 = vmatpush1.bf16.msra.mxu0 0
        %406 = vmatprep.subr.bf16.mxu0 0
        %407 = vmatpush1.bf16.msra.mxu0 0
        %408 = vmatprep.subr.bf16.mxu0 0
        %409 = vmatpush1.bf16.msra.mxu0 0
        %410 = vmatprep.subr.bf16.mxu0 0
        %411 = vmatpush1.bf16.msra.mxu0 0
        %412 = vmatprep.subr.bf16.mxu0 0
        %413 = vmatpush1.bf16.msra.mxu0 0
        %414 = vmatprep.subr.bf16.mxu0 0
        %415 = vmatpush1.bf16.msra.mxu0 0
        %416 = vmatprep.subr.bf16.mxu0 0
        %417 = vmatpush1.bf16.msra.mxu0 0
        %418 = vmatprep.subr.bf16.mxu0 0
        %419 = vmatpush1.bf16.msra.mxu0 0
        %420 = vmatprep.subr.bf16.mxu0 0
        %421 = vmatpush1.bf16.msra.mxu0 0
        %422 = vmatprep.subr.bf16.mxu0 0
        %423 = vmatpush1.bf16.msra.mxu0 0
        %424 = vmatprep.subr.bf16.mxu0 0
        %425 = vmatpush1.bf16.msra.mxu0 0
        %426 = vmatprep.subr.bf16.mxu0 0
        %427 = vmatpush1.bf16.msra.mxu0 0
        %428 = vmatprep.mubr.bf16.mxu0 0
        %429 = vmatmul.mubr.bf16.gmra.mrb[0].mxu0 %v394
        %v430 = vpop.f32.mrb[0].mxu0
        %v431 = vadd.f32 %v345, %v430
        %v432 = vpop.f32.mrb[0].mxu0
        %v433 = vadd.f32 %v349, %v432
        %v434 = vpop.f32.mrb[0].mxu0
        %v435 = vadd.f32 %v345, %v434
        %v436 = vpop.f32.mrb[0].mxu0
        %v437 = vadd.f32 %v349, %v436
        %438 = vdwg.mxu0
        %v439 = vmax.f32 %v431, 0.0
        %v440 = vmax.f32 %v433, 0.0
        %v441 = vmax.f32 %v435, 0.0
        %v442 = vmax.f32 %v437, 0.0
        %v443 = vpack.c.bf16 %v441, %v439
        %v444 = vpack.c.bf16 %v442, %v440
        %v445 = vld [vmem:[#allocation7] sm:$0xf]
        %v446 = vld [vmem:[#allocation7 + $0x4] sm:$0xf]
        %v447 = vld [vmem:[#allocation7 + $0x8] sm:$0xf]
        %v448 = vld [vmem:[#allocation7 + $0xc] sm:$0xf]
        %v449 = vld [vmem:[#allocation7 + $0x10] sm:$0xf]
        %v450 = vld [vmem:[#allocation7 + $0x14] sm:$0xf]
        %v451 = vld [vmem:[#allocation7 + $0x18] sm:$0xf]
        %v452 = vld [vmem:[#allocation7 + $0x1c] sm:$0xf]
        %v453 = vld [vmem:[#allocation7 + $0x20] sm:$0xf]
        %v454 = vld [vmem:[#allocation7 + $0x24] sm:$0xf]
        %v455 = vld [vmem:[#allocation7 + $0x28] sm:$0xf]
        %v456 = vld [vmem:[#allocation7 + $0x2c] sm:$0xf]
        %v457 = vld [vmem:[#allocation7 + $0x30] sm:$0xf]
        %v458 = vld [vmem:[#allocation7 + $0x34] sm:$0xf]
        %v459 = vld [vmem:[#allocation7 + $0x38] sm:$0xf]
        %v460 = vld [vmem:[#allocation7 + $0x3c] sm:$0xf]
        %v461 = vld [vmem:[#allocation7 + $0x40] sm:$0xf]
        %v462 = vld [vmem:[#allocation7 + $0x44] sm:$0xf]
        %v463 = vld [vmem:[#allocation7 + $0x48] sm:$0xf]
        %v464 = vld [vmem:[#allocation7 + $0x4c] sm:$0xf]
        %v465 = vld [vmem:[#allocation7 + $0x50] sm:$0xf]
        %v466 = vld [vmem:[#allocation7 + $0x54] sm:$0xf]
        %v467 = vld [vmem:[#allocation7 + $0x58] sm:$0xf]
        %v468 = vld [vmem:[#allocation7 + $0x5c] sm:$0xf]
        %v469 = vld [vmem:[#allocation7 + $0x60] sm:$0xf]
        %v470 = vld [vmem:[#allocation7 + $0x64] sm:$0xf]
        %v471 = vld [vmem:[#allocation7 + $0x68] sm:$0xf]
        %v472 = vld [vmem:[#allocation7 + $0x6c] sm:$0xf]
        %v473 = vld [vmem:[#allocation7 + $0x70] sm:$0xf]
        %v474 = vld [vmem:[#allocation7 + $0x74] sm:$0xf]
        %v475 = vld [vmem:[#allocation7 + $0x78] sm:$0xf]
        %v476 = vld [vmem:[#allocation7 + $0x7c] sm:$0xf]
        %v477 = vld [vmem:[%s4] sm:$0x1]
        %v479 = vlaneseq
        %v480 = vshrl.u32 %v479, 7
        %v481 = vsub.s32 0, %v480
        %v482 = vrot.slane %v477, %v481
        %v516 = vunpack.c.l.b16 %v445
        %v517 = vunpack.c.l.b16 %v446
        %v518 = vunpack.c.l.b16 %v447
        %v519 = vunpack.c.l.b16 %v448
        %v520 = vunpack.c.l.b16 %v449
        %v521 = vunpack.c.l.b16 %v450
        %v522 = vunpack.c.l.b16 %v451
        %v523 = vunpack.c.l.b16 %v452
        %v524 = vunpack.c.l.b16 %v453
        %v525 = vunpack.c.l.b16 %v454
        %v526 = vunpack.c.l.b16 %v455
        %v527 = vunpack.c.l.b16 %v456
        %v528 = vunpack.c.l.b16 %v457
        %v529 = vunpack.c.l.b16 %v458
        %v530 = vunpack.c.l.b16 %v459
        %v531 = vunpack.c.l.b16 %v460
        %v532 = vunpack.c.l.b16 %v461
        %v533 = vunpack.c.l.b16 %v462
        %v534 = vunpack.c.l.b16 %v463
        %v535 = vunpack.c.l.b16 %v464
        %v536 = vunpack.c.l.b16 %v465
        %v537 = vunpack.c.l.b16 %v466
        %v538 = vunpack.c.l.b16 %v467
        %v539 = vunpack.c.l.b16 %v468
        %v540 = vunpack.c.l.b16 %v469
        %v541 = vunpack.c.l.b16 %v470
        %v542 = vunpack.c.l.b16 %v471
        %v543 = vunpack.c.l.b16 %v472
        %v544 = vunpack.c.l.b16 %v473
        %v545 = vunpack.c.l.b16 %v474
        %v546 = vunpack.c.l.b16 %v475
        %v547 = vunpack.c.l.b16 %v476
        %v548 = vpack.c.b16 %v517, %v516
        %v549 = vpack.c.b16 %v519, %v518
        %v550 = vpack.c.b16 %v521, %v520
        %v551 = vpack.c.b16 %v523, %v522
        %v552 = vpack.c.b16 %v525, %v524
        %v553 = vpack.c.b16 %v527, %v526
        %v554 = vpack.c.b16 %v529, %v528
        %v555 = vpack.c.b16 %v531, %v530
        %v556 = vpack.c.b16 %v533, %v532
        %v557 = vpack.c.b16 %v535, %v534
        %v558 = vpack.c.b16 %v537, %v536
        %v559 = vpack.c.b16 %v539, %v538
        %v560 = vpack.c.b16 %v541, %v540
        %v561 = vpack.c.b16 %v543, %v542
        %v562 = vpack.c.b16 %v545, %v544
        %v563 = vpack.c.b16 %v547, %v546
        %580 = vmatprep.subr.bf16.mxu0 0
        %581 = vmatpush1.bf16.msra.mxu0 %v548
        %582 = vmatprep.subr.bf16.mxu0 0
        %583 = vmatpush1.bf16.msra.mxu0 %v549
        %584 = vmatprep.subr.bf16.mxu0 0
        %585 = vmatpush1.bf16.msra.mxu0 %v550
        %586 = vmatprep.subr.bf16.mxu0 0
        %587 = vmatpush1.bf16.msra.mxu0 %v551
        %588 = vmatprep.subr.bf16.mxu0 0
        %589 = vmatpush1.bf16.msra.mxu0 %v552
        %590 = vmatprep.subr.bf16.mxu0 0
        %591 = vmatpush1.bf16.msra.mxu0 %v553
        %592 = vmatprep.subr.bf16.mxu0 0
        %593 = vmatpush1.bf16.msra.mxu0 %v554
        %594 = vmatprep.subr.bf16.mxu0 0
        %595 = vmatpush1.bf16.msra.mxu0 %v555
        %596 = vmatprep.subr.bf16.mxu0 0
        %597 = vmatpush1.bf16.msra.mxu0 %v556
        %598 = vmatprep.subr.bf16.mxu0 0
        %599 = vmatpush1.bf16.msra.mxu0 %v557
        %600 = vmatprep.subr.bf16.mxu0 0
        %601 = vmatpush1.bf16.msra.mxu0 %v558
        %602 = vmatprep.subr.bf16.mxu0 0
        %603 = vmatpush1.bf16.msra.mxu0 %v559
        %604 = vmatprep.subr.bf16.mxu0 0
        %605 = vmatpush1.bf16.msra.mxu0 %v560
        %606 = vmatprep.subr.bf16.mxu0 0
        %607 = vmatpush1.bf16.msra.mxu0 %v561
        %608 = vmatprep.subr.bf16.mxu0 0
        %609 = vmatpush1.bf16.msra.mxu0 %v562
        %610 = vmatprep.subr.bf16.mxu0 0
        %611 = vmatpush1.bf16.msra.mxu0 %v563
        %612 = vmatprep.mubr.bf16.mxu0 %v444
        %613 = vmatmul.mubr.bf16.gmra.mrb[0].mxu0 %v443
        %v614 = vpop.f32.mrb[0].mxu0
        %v615 = vadd.f32 %v482, %v614
        %v616 = vpop.f32.mrb[0].mxu0
        %v617 = vpop.f32.mrb[0].mxu0
        %v618 = vadd.f32 %v482, %v617
        %v619 = vpop.f32.mrb[0].mxu0
        %620 = vdwg.mxu0
        %v621 = vsel %vm392, %v329, 0.0
        %v622 = vsel %vm392, %v330, 0.0
        %v623 = vadd.f32 %v621, %v615
        %v624 = vadd.f32 %v622, %v618
        %625 = vadd.xlane.f32.xlu0 %v623
        %v626 = vpop.xlane.xlu0 %625
        %627 = vadd.xlane.f32.xlu0 %v624
        %v628 = vpop.xlane.xlu0 %627
        %v629 = vmul.f32 %v626, 0.015625
        %v630 = vmul.f32 %v628, 0.015625
        %v631 = vsub.f32 %v623, %v629
        %v632 = vsub.f32 %v624, %v630
        %v633 = vmul.f32 %v631, %v631
        %v634 = vmul.f32 %v632, %v632
        %635 = vadd.xlane.f32.xlu0 %v633
        %v636 = vpop.xlane.xlu0 %635
        %637 = vadd.xlane.f32.xlu0 %v634
        %v638 = vpop.xlane.xlu0 %637
        %v639 = vmul.f32 %v629, 64.0
        %v640 = vmul.f32 %v630, 64.0
        %v641 = vmul.f32 %v639, %v629
        %v642 = vmul.f32 %v640, %v630
        %v643 = vsub.f32 %v636, %v641
        %v644 = vsub.f32 %v638, %v642
        %v645 = vmul.f32 %v643, 0.015625
        %v646 = vmul.f32 %v644, 0.015625
        %v647 = vadd.f32 %v645, 1e-05
        %v648 = vadd.f32 %v646, 1e-05
        %v649 = vrsqrt.pop %v647
        %v650 = vrsqrt.pop %v648
        %v651 = vmul.f32 %v631, %v649
        %v652 = vmul.f32 %v632, %v650
        %v653 = vld [vmem:[%s5] sm:$0x1]
        %v655 = vlaneseq
        %v656 = vshrl.u32 %v655, 7
        %v657 = vsub.s32 0, %v656
        %v658 = vrot.slane %v653, %v657
        %v660 = vmul.f32 %v651, %v658
        %v661 = vmul.f32 %v652, %v658
        %v662 = vld [vmem:[%s6] sm:$0x1]
        %v664 = vlaneseq
        %v665 = vshrl.u32 %v664, 7
        %v666 = vsub.s32 0, %v665
        %v667 = vrot.slane %v662, %v666
        %v669 = vadd.f32 %v660, %v667
        %v670 = vadd.f32 %v661, %v667
        %671 = vst [vmem:[%s325] sm:$0xff] %v669
        %672 = vst [vmem:[%s325 + $0x8] sm:$0xff] %v670
        %s673 = sand.u32 %s185, 1
        %s674 = scalar_lea.sflag [#allocation4], %s673
        %s675 = sand.u32 %s185, 1
        %s676 = smul.addr %s675, 16
        %s677 = scalar_lea.vmem [#allocation8], %s676
        // Predicated region
        $region61: #{tpu_custom_call.1} parent=47 // pred_check
          %p678 = pneg %p195
        $region62: #{tpu_custom_call.1} parent=47 // pred_check_branch
          %680 = sbr.rel (%p678) target = $region64
        $region63: #{tpu_custom_call.1} parent=47 // pred_region
          %s681 = smul.u32 2, %s25
          %s683 = ssub.s32 256, 256
          %684 = vsyncadd %s674, %s683
          %s685 = smul.addr %s681, 128
          %s686 = scalar_lea.hbm %s7, %s685
          %s687 = sshll.u32 %s677, 4
          %s688 = int_to_ptr.vmem [resolvable:$true] %s687
          %693 = dma.vmem_to_hbm [thread:$0]  %s688, 256, %s686, %s674, 128, 128, 8
        $region64: #{tpu_custom_call.1} parent=47 // pred_fallthru
          _
      $region48: #{tpu_custom_call.1} parent=5 // pred_fallthru
        _
      %p694 = scmp.le.s32.totalorder 2, %s20
      // Predicated region
      $region65: #{tpu_custom_call.1} parent=5 // pred_check
        %p695 = pneg %p694
      $region66: #{tpu_custom_call.1} parent=5 // pred_check_branch
        %697 = sbr.rel (%p695) target = $region68
      $region67: #{tpu_custom_call.1} parent=5 // pred_region
        %s698 = ssub.s32 %s20, 2
        // Predicated region
        $region69: #{tpu_custom_call.1} parent=67 // pred_check
          %p699 = pneg %p201
        $region70: #{tpu_custom_call.1} parent=67 // pred_check_branch
          %701 = sbr.rel (%p699) target = $region72
        $region71: #{tpu_custom_call.1} parent=67 // pred_region
          %s702 = sand.u32 %s186, 1
          %s703 = scalar_lea.sflag [#allocation4], %s702
          %s704 = sand.u32 %s186, 1
          %s705 = smul.addr %s704, 16
          %s706 = scalar_lea.vmem [#allocation8], %s705
          %707 = dma.done %s703, 256
        $region72: #{tpu_custom_call.1} parent=67 // pred_fallthru
          _
      $region68: #{tpu_custom_call.1} parent=5 // pred_fallthru
        _
    $region6: #{tpu_custom_call.1} parent=1 // loop_footer
      %s24 = sadd.s32 1, %s20
    $region7: #{tpu_custom_call.1} parent=1 // loop_footer_branch
      %19 = sbr.rel target = $region3
    $region8: #{tpu_custom_call.1} parent=1 // loop_exit
      _
    %708 = vsyncpa [#allocation3], 1
    %s709 = scalar_lea.sflag [#allocation3], 1
    %710 = vsyncpa %s709, 1
    %711 = vsyncpa [#allocation6], 1
    %712 = vsyncpa [#allocation4], 1
    %s713 = scalar_lea.sflag [#allocation4], 1
    %714 = vsyncpa %s713, 1

</llo_original>
